<compile_context>
chip_gen: v6e
topology: v6e:2x2x1
jax: 0.10.0
libtpu: 0.0.40
codegen_flags: <defaults>
</compile_context>

<pallas_src>
import math
import jax
import jax.numpy as jnp
from jax import lax
from jax.experimental import pallas as pl
from jax.experimental.pallas import tpu as pltpu

HIDDEN = 30          # nn.Linear(4, 30)
RBLK = 32            # hidden dim padded to a sublane-tile multiple
LANES = 128          # lane width; requires nq*nl <= 128 (true for this model)


def _mlp_kernel(p_ref, o_ref):
    # Layer 1 on the VPU: elementwise product of two tile-aligned (32,128)
    # blocks, then a lane (axis=-1) reduction on the XLU.  Bias b1 is folded in
    # via the augmented lane 4 of w1T_aug (alfa_aug has a 1 there).
    a_blk = p_ref[0:RBLK, :]                 # (32,128) alfa_aug, replicated rows
    w1t = p_ref[RBLK:2 * RBLK, :]            # (32,128) w1T_aug
    h_col = jnp.tanh(jnp.sum(a_blk * w1t, axis=-1, keepdims=True))   # (32,1)
    # Rows >= HIDDEN of h_col are tanh(0)=0.  Set row HIDDEN to 1 so that the
    # b2 row of w2_aug is picked up by the layer-2 reduction (bias folding).
    ones_row = (lax.broadcasted_iota(jnp.int32, (RBLK, LANES), 0)
                == HIDDEN).astype(jnp.float32)                       # (32,128)
    h_aug = h_col + ones_row                                          # (32,128)
    # Layer 2 on the VPU: broadcast-multiply + sublane (axis=0) reduction.
    w2a = p_ref[2 * RBLK:3 * RBLK, :]        # (32,128) w2_aug (row 30 = b2)
    o_ref[...] = jnp.tanh(jnp.sum(h_aug * w2a, axis=0, keepdims=True))  # (1,128)


def pack_params(alfa, w1, b1, w2, b2, nq, nl):
    """Pack all parameters into one (96,128) f32 slab (single input DMA)."""
    n_out = nq * nl
    assert n_out <= LANES, "tile w2 along N with a parallel grid axis for large nq*nl"
    # Block 0: augmented alfa row, replicated across all 32 rows.
    alfa_aug = (jnp.zeros((LANES,), jnp.float32)
                .at[:4].set(alfa.reshape(4))
                .at[4].set(1.0))
    blk_a = jnp.broadcast_to(alfa_aug, (RBLK, LANES))
    # Block 1: w1 transposed (30,4) with b1 in lane 4.
    blk_w1 = (jnp.zeros((RBLK, LANES), jnp.float32)
              .at[:HIDDEN, :4].set(w1.T)
              .at[:HIDDEN, 4].set(b1.reshape(HIDDEN)))
    # Block 2: w2 (30,N) with b2 as row 30.
    blk_w2 = (jnp.zeros((RBLK, LANES), jnp.float32)
              .at[:HIDDEN, :n_out].set(w2)
              .at[HIDDEN, :n_out].set(b2.reshape(n_out)))
    return jnp.concatenate([blk_a, blk_w1, blk_w2], axis=0)   # (96,128)


def model2_forward(x, packed, nq, nl):
    """Pallas implementation of Model2.forward's trainable compute path.

    Returns the flattened theta vector of shape (nq*nl,).  `x` is accepted for
    interface parity but is only consumed by the external quantum node.
    """
    n_out = nq * nl
    vmem = pltpu.MemorySpace.VMEM
    y = pl.pallas_call(
        _mlp_kernel,
        out_shape=jax.ShapeDtypeStruct((1, LANES), jnp.float32),
        in_specs=[pl.BlockSpec(memory_space=vmem)],    # one packed slab
        out_specs=pl.BlockSpec(memory_space=vmem),
        cost_estimate=pl.CostEstimate(
            flops=2 * 4 * HIDDEN + 2 * HIDDEN * n_out,
            transcendentals=HIDDEN + n_out,
            bytes_accessed=packed.size * 4 + LANES * 4,
        ),
    )(packed)
    theta = y[0, :n_out]
    # TODO(synk): np.savetxt side effect and qlayer(x, theta) (external
    # PennyLane qnode) have no Pallas equivalent; we return the theta vector
    # the quantum node would receive.
    return theta


def init_params(key, nq, nl):
    """Deterministic parameter init mirroring the PyTorch module's __init__."""
    k_alfa, k_w1, k_b1, k_w2, k_b2 = jax.random.split(key, 5)
    # alfa ~ U[0, 2*pi)  (torch.nn.init.uniform_(b=2*pi))
    alfa = jax.random.uniform(k_alfa, (1, 4), jnp.float32, 0.0, 2.0 * math.pi)
    # nn.Linear default init: U(-1/sqrt(fan_in), 1/sqrt(fan_in))
    bound1 = 1.0 / math.sqrt(4.0)
    w1 = jax.random.uniform(k_w1, (4, HIDDEN), jnp.float32, -bound1, bound1)
    b1 = jax.random.uniform(k_b1, (1, HIDDEN), jnp.float32, -bound1, bound1)
    bound2 = 1.0 / math.sqrt(float(HIDDEN))
    w2 = jax.random.uniform(k_w2, (HIDDEN, nq * nl), jnp.float32, -bound2, bound2)
    b2 = jax.random.uniform(k_b2, (1, nq * nl), jnp.float32, -bound2, bound2)
    return alfa, w1, b1, w2, b2


if __name__ == "__main__":
    nq, nl = 4, 2          # output dim nq*nl = 8, consistent with the module
    key = jax.random.PRNGKey(0)
    k_params, k_x = jax.random.split(key)

    alfa, w1, b1, w2, b2 = init_params(k_params, nq, nl)
    # Example data input that would be fed to the quantum node (batch=2, 4 features).
    x = jax.random.normal(k_x, (2, 4), jnp.float32)

    # Pack once (in training this would be reused across calls/epochs).
    packed = pack_params(alfa, w1, b1, w2, b2, nq, nl)

    theta = model2_forward(x, packed, nq, nl)
    theta = jax.block_until_ready(theta)

    # Pure-JAX reference check of the MLP path.
    ref = jnp.tanh(jnp.tanh(alfa @ w1 + b1) @ w2 + b2).reshape(nq * nl)
    assert theta.shape == (nq * nl,)
    assert jnp.allclose(theta, ref, atol=1e-5), "mismatch vs JAX reference"

    print("KERNEL_OK")
</pallas_src>

<mosaic_0001>
module attributes {stable_mosaic.version = 11 : i64} {
  func.func @_mlp_kernel(%arg0: memref<96x128xf32, #tpu.memory_space<vmem>>, %arg1: memref<1x128xf32, #tpu.memory_space<vmem>>) attributes {dimension_semantics = [], scalar_prefetch = 0 : i64, scratch_operands = 0 : i64, tpu.core_type = #tpu.core_type<tc>} {
    %c0 = arith.constant 0 : index
    %c0_0 = arith.constant 0 : index
    %0 = vector.load %arg0[%c0, %c0_0] : memref<96x128xf32, #tpu.memory_space<vmem>>, vector<32x128xf32>
    %c32 = arith.constant 32 : index
    %c0_1 = arith.constant 0 : index
    %1 = vector.load %arg0[%c32, %c0_1] : memref<96x128xf32, #tpu.memory_space<vmem>>, vector<32x128xf32>
    %2 = arith.mulf %0, %1 : vector<32x128xf32>
    %cst = arith.constant dense<0.000000e+00> : vector<32xf32>
    %3 = vector.multi_reduction <add>, %2, %cst [1] : vector<32x128xf32> to vector<32xf32>
    %4 = vector.shape_cast %3 : vector<32xf32> to vector<32x1xf32>
    %5 = math.tanh %4 : vector<32x1xf32>
    %6 = tpu.iota {dimensions = array<i32: 0>} : vector<32x128xi32>
    %c30_i32 = arith.constant 30 : i32
    %7 = vector.broadcast %c30_i32 : i32 to vector<32x128xi32>
    %8 = arith.cmpi eq, %6, %7 : vector<32x128xi32>
    %9 = arith.extui %8 : vector<32x128xi1> to vector<32x128xi32>
    %10 = arith.sitofp %9 : vector<32x128xi32> to vector<32x128xf32>
    %11 = vector.broadcast %5 : vector<32x1xf32> to vector<32x128xf32>
    %12 = arith.addf %11, %10 : vector<32x128xf32>
    %c64 = arith.constant 64 : index
    %c0_2 = arith.constant 0 : index
    %13 = vector.load %arg0[%c64, %c0_2] : memref<96x128xf32, #tpu.memory_space<vmem>>, vector<32x128xf32>
    %14 = arith.mulf %12, %13 : vector<32x128xf32>
    %cst_3 = arith.constant dense<0.000000e+00> : vector<128xf32>
    %15 = vector.multi_reduction <add>, %14, %cst_3 [0] : vector<32x128xf32> to vector<128xf32>
    %16 = vector.shape_cast %15 : vector<128xf32> to vector<1x128xf32>
    %17 = math.tanh %16 : vector<1x128xf32>
    %c0_4 = arith.constant 0 : index
    %c0_5 = arith.constant 0 : index
    %18 = vector.load %arg1[%c0_4, %c0_5] : memref<1x128xf32, #tpu.memory_space<vmem>>, vector<1x128xf32>
    tpu.vector_store %arg1[%c0_4, %c0_5], %17 {strides = array<i32>} : memref<1x128xf32, #tpu.memory_space<vmem>>, vector<1x128xf32>,
    return
  }
}

</mosaic_0001>

<llo_original>
// kernel: tpu_custom_call.1
$region0: #{tpu_custom_call.1}
  #allocation0 [shape = 'u32[]', space=smem, size = 0x4, offset = 0x4, fixed_abs, tag = 'smem constant byte address 0x4 - core index']
  #allocation1 [shape = 'u32[144,128]{1,0:T(1,128)}', space=vmem, size = 0x12000, scoped, tag = 'internal scratch']
  %s0 = inlined_call_operand.hbm [shape: f32[96,128], index: 0, kind: input, shape index: {}]
  %s1 = inlined_call_operand.hbm [shape: f32[1,128], index: 1, kind: output, shape index: {}]
  %s2 = sld [smem:[#allocation0]]
  $region18: #{tpu_custom_call.1} parent=0
    _
  %s4 = ssub.s32 1, %s2
  %s5 = scalar_select 0, %s4, %s2
  $region1: #{tpu_custom_call.1} parent=0
    #allocation2 [shape = 'u8[49152]{0}', space=vmem, size = 0xc000, scoped, tag = 'input window, operand 0, single buffered']
    #allocation3 [shape = 's32[1]{0}', space=sflag, size = 0x4, scoped, tag = 'scoped memory for tpu_custom_call.1']
    #allocation4 [shape = 's32[1]{0}', space=sflag, size = 0x4, scoped, tag = 'scoped memory for tpu_custom_call.1']
    #allocation5 [shape = 'u8[512]{0}', space=vmem, size = 0x400, scoped, tag = 'output window, operand 0, single buffered']
    %6 = vsyncpa [#allocation3], 0
    %7 = vsyncpa [#allocation4], 0
    // Predicated region
    $region2: #{tpu_custom_call.1} parent=1 // pred_check
      _
    $region3: #{tpu_custom_call.1} parent=1 // pred_check_branch
      %9 = sbr.rel (0) target = $region5
    $region4: #{tpu_custom_call.1} parent=1 // pred_region
      %s11 = ssub.s32 1536, 1536
      %12 = vsyncadd [#allocation3], %s11
      %s13 = sshll.u32 [#allocation2], 4
      %s14 = int_to_ptr.vmem [resolvable:$true] %s13
      %19 = dma.hbm_to_vmem [thread:$0]  %s0, 1536, %s14, [#allocation3], 128, 128, 8
    $region5: #{tpu_custom_call.1} parent=1 // pred_fallthru
      _
    // Predicated region
    $region6: #{tpu_custom_call.1} parent=1 // pred_check
      _
    $region7: #{tpu_custom_call.1} parent=1 // pred_check_branch
      %21 = sbr.rel (0) target = $region9
    $region8: #{tpu_custom_call.1} parent=1 // pred_region
      %22 = dma.done [#allocation3], 1536
    $region9: #{tpu_custom_call.1} parent=1 // pred_fallthru
      _
    %v23 = vld [vmem:[#allocation2] sm:$0xff]
    %v24 = vld [vmem:[#allocation2 + $0x8] sm:$0xff]
    %v25 = vld [vmem:[#allocation2 + $0x10] sm:$0xff]
    %v26 = vld [vmem:[#allocation2 + $0x18] sm:$0xff]
    %v27 = vld [vmem:[#allocation2 + $0x20] sm:$0xff]
    %v28 = vld [vmem:[#allocation2 + $0x28] sm:$0xff]
    %v29 = vld [vmem:[#allocation2 + $0x30] sm:$0xff]
    %v30 = vld [vmem:[#allocation2 + $0x38] sm:$0xff]
    %v31 = vmul.f32 %v23, %v27
    %v32 = vmul.f32 %v24, %v28
    %v33 = vmul.f32 %v25, %v29
    %v34 = vmul.f32 %v26, %v30
    %35 = vadd.xlane.f32.xlu0 %v31
    %v36 = vpop.xlane.xlu0 %35
    %37 = vadd.xlane.f32.xlu0 %v32
    %v38 = vpop.xlane.xlu0 %37
    %39 = vadd.xlane.f32.xlu0 %v33
    %v40 = vpop.xlane.xlu0 %39
    %41 = vadd.xlane.f32.xlu0 %v34
    %v42 = vpop.xlane.xlu0 %41
    %v43 = vtanh.pop %v36
    %v44 = vtanh.pop %v38
    %v45 = vtanh.pop %v40
    %v46 = vtanh.pop %v42
    %v47 = vlaneseq
    %v48 = vshrl.u32 %v47, 7
    %v49 = vadd.s32 %v48, 8
    %v50 = vadd.s32 %v48, 16
    %v51 = vadd.s32 %v48, 24
    %vm52 = vcmp.eq.s32.totalorder %v48, 30
    %vm53 = vcmp.eq.s32.totalorder %v49, 30
    %vm54 = vcmp.eq.s32.totalorder %v50, 30
    %vm55 = vcmp.eq.s32.totalorder %v51, 30
    %v56 = vsel %vm52, 1, 0
    %v57 = vsel %vm53, 1, 0
    %v58 = vsel %vm54, 1, 0
    %v59 = vsel %vm55, 1, 0
    %v60 = vcvt.s32.f32 %v56
    %v61 = vcvt.s32.f32 %v57
    %v62 = vcvt.s32.f32 %v58
    %v63 = vcvt.s32.f32 %v59
    %v64 = vadd.f32 %v43, %v60
    %v65 = vadd.f32 %v44, %v61
    %v66 = vadd.f32 %v45, %v62
    %v67 = vadd.f32 %v46, %v63
    %v68 = vld [vmem:[#allocation2 + $0x40] sm:$0xff]
    %v69 = vld [vmem:[#allocation2 + $0x48] sm:$0xff]
    %v70 = vld [vmem:[#allocation2 + $0x50] sm:$0xff]
    %v71 = vld [vmem:[#allocation2 + $0x58] sm:$0xff]
    %v72 = vmul.f32 %v64, %v68
    %v73 = vmul.f32 %v65, %v69
    %v74 = vmul.f32 %v66, %v70
    %v75 = vmul.f32 %v67, %v71
    %v76 = vadd.f32 %v72, %v73
    %v77 = vadd.f32 %v76, %v74
    %v78 = vadd.f32 %v77, %v75
    %v79 = vrot.slane %v78, 4
    %v80 = vadd.f32 %v78, %v79
    %v81 = vrot.slane %v80, 2
    %v82 = vadd.f32 %v80, %v81
    %v83 = vrot.slane %v82, 1
    %v84 = vadd.f32 %v82, %v83
    %v85 = vtanh.pop %v84
    %86 = vst [vmem:[#allocation5] sm:$0x1] %v85
    // Predicated region
    $region10: #{tpu_custom_call.1} parent=1 // pred_check
      _
    $region11: #{tpu_custom_call.1} parent=1 // pred_check_branch
      %88 = sbr.rel (0) target = $region13
    $region12: #{tpu_custom_call.1} parent=1 // pred_region
      %s90 = ssub.s32 16, 16
      %91 = vsyncadd [#allocation4], %s90
      %s93 = sshll.u32 [#allocation5], 4
      %s94 = int_to_ptr.vmem [resolvable:$true] %s93
      %96 = dma.vmem_to_hbm [thread:$0]  %s94, 16, %s1, [#allocation4]
    $region13: #{tpu_custom_call.1} parent=1 // pred_fallthru
      _
    // Predicated region
    $region14: #{tpu_custom_call.1} parent=1 // pred_check
      _
    $region15: #{tpu_custom_call.1} parent=1 // pred_check_branch
      %98 = sbr.rel (0) target = $region17
    $region16: #{tpu_custom_call.1} parent=1 // pred_region
      %99 = dma.done [#allocation4], 16
    $region17: #{tpu_custom_call.1} parent=1 // pred_fallthru
      _
    %100 = vsyncpa [#allocation3], 1
    %101 = vsyncpa [#allocation4], 1

</llo_original>
